<compile_context>
chip_gen: v7x
topology: tpu7x:2x2x1
jax: 0.10.0
libtpu: 0.0.40
codegen_flags: <defaults>
</compile_context>

<pallas_src>
import functools

import jax
import jax.numpy as jnp
from jax.experimental import pallas as pl
from jax.experimental.pallas import tpu as pltpu

MID_SIZE = 100  # matches the PyTorch module default


def _chat_kernel(coef_ref, x_ref, out_ref):
    # x: (TILE_N, F) float32 in VMEM; coef: (4,) float32 in SMEM.
    x = x_ref[...].astype(jnp.float32)
    f = x.shape[1]

    # Single-pass per-row statistics (one VMEM read of the tile).
    s = jnp.sum(x, axis=1, keepdims=True)        # (T, 1)
    sq = jnp.sum(x * x, axis=1, keepdims=True)   # (T, 1)
    mx = jnp.max(x, axis=1, keepdims=True)       # (T, 1)

    mean = s * (1.0 / f)
    # Unbiased variance (ddof=1, like torch.std), clamped against tiny
    # negative values from fp cancellation in the one-pass form.
    var = jnp.maximum((sq - s * mean) * (1.0 / (f - 1)), 0.0)
    std = jnp.sqrt(var)

    # Collapsed 3->1 affine (whole MLP) + sigmoid gate.
    z = (coef_ref[0] * mean + coef_ref[1] * std + coef_ref[2] * mx
         + coef_ref[3])                          # (T, 1)
    gate = jax.nn.sigmoid(z)

    # Single full-tile, lane-dense store.
    out_ref[...] = (x * gate).astype(out_ref.dtype)


def _round_up(a, b):
    return ((a + b - 1) // b) * b


def _collapse_params(params):
    """Fold the activation-free 3->mid->mid->1 MLP into 4 scalars.

    feats @ w1 + b1, then @ w2 + b2, then @ w3 + b3  ==
        feats @ (w1 @ w2 @ w3) + (b1 @ w2 @ w3 + b2 @ w3 + b3)
    """
    w1, b1, w2, b2, w3, b3 = params
    w_eff = (w1 @ w2) @ w3                       # (3, 1)
    b_eff = (b1 @ w2) @ w3 + b2 @ w3 + b3        # (1, 1)
    return jnp.concatenate(
        [w_eff.reshape(3), b_eff.reshape(1)]).astype(jnp.float32)  # (4,)


@functools.partial(jax.jit, static_argnames=("tile_n",))
def chat_model_forward(mid_feature, params, *, tile_n=8192):
    """mid_feature: (B, C, F) float32. Returns (B, C, F)."""
    B, C, F = mid_feature.shape
    N = B * C
    x2d = mid_feature.reshape(N, F)

    # Row-tile size: multiple of 8 (sublane), capped for tiny inputs.
    tn = min(tile_n, _round_up(N, 8))
    grid = (pl.cdiv(N, tn),)                     # partial last block is masked

    coefs = _collapse_params(params)

    out = pl.pallas_call(
        _chat_kernel,
        out_shape=jax.ShapeDtypeStruct((N, F), mid_feature.dtype),
        grid=grid,
        in_specs=[
            # 4 collapsed coefficients: SMEM scalars, no VMEM tile / DMA churn.
            pl.BlockSpec(memory_space=pltpu.MemorySpace.SMEM),
            pl.BlockSpec((tn, F), lambda i: (i, 0)),
        ],
        out_specs=pl.BlockSpec((tn, F), lambda i: (i, 0)),
        compiler_params=pltpu.CompilerParams(
            # rows independent -> shard grid steps across TCs on v7x megacore
            dimension_semantics=("parallel",),
            vmem_limit_bytes=32 * 1024 * 1024,
        ),
    )(coefs, x2d)

    return out.reshape(B, C, F)


def init_params(key, mid_size=MID_SIZE):
    """Deterministic synthetic parameters. Weights stored as (in, out);
    biases as (1, out) so the math is x @ W + b (same as nn.Linear)."""
    k1, k2, k3, k4, k5, k6 = jax.random.split(key, 6)
    w1 = jax.random.normal(k1, (3, mid_size), jnp.float32) * 0.1
    b1 = jax.random.normal(k2, (1, mid_size), jnp.float32) * 0.1
    w2 = jax.random.normal(k3, (mid_size, mid_size), jnp.float32) * 0.1
    b2 = jax.random.normal(k4, (1, mid_size), jnp.float32) * 0.1
    w3 = jax.random.normal(k5, (mid_size, 1), jnp.float32) * 0.1
    b3 = jax.random.normal(k6, (1, 1), jnp.float32) * 0.1
    return (w1, b1, w2, b2, w3, b3)


def _reference(mid_feature, params):
    """Pure-JAX reference of the torch forward, for sanity checking."""
    B, C, F = mid_feature.shape
    x = mid_feature.reshape(B * C, F)
    avg_f = jnp.mean(x, axis=1)
    max_f = jnp.max(x, axis=1)
    std_f = jnp.std(x, axis=1, ddof=1)
    feats = jnp.stack([avg_f, std_f, max_f], axis=1)  # (N, 3)
    w1, b1, w2, b2, w3, b3 = params
    h = feats @ w1 + b1
    h = h @ w2 + b2
    h = h @ w3 + b3
    w = jax.nn.sigmoid(h)
    return (x * w).reshape(B, C, F)


if __name__ == "__main__":
    key = jax.random.PRNGKey(0)
    kx, kp = jax.random.split(key)

    B, C, F = 2, 4, 128  # small shapes; F lane-dense
    mid_feature = jax.random.normal(kx, (B, C, F), jnp.float32)
    params = init_params(kp)

    out = chat_model_forward(mid_feature, params)
    out = jax.block_until_ready(out)

    ref = _reference(mid_feature, params)
    assert out.shape == (B, C, F)
    assert jnp.allclose(out, ref, atol=1e-4, rtol=1e-4), "mismatch vs reference"

    print("KERNEL_OK")
</pallas_src>

<mosaic_0001>
module attributes {stable_mosaic.version = 11 : i64} {
  func.func @_chat_kernel(%arg0: i32, %arg1: memref<4xf32, #tpu.memory_space<smem>>, %arg2: memref<8x128xf32, #tpu.memory_space<vmem>>, %arg3: memref<8x128xf32, #tpu.memory_space<vmem>>) attributes {dimension_semantics = [#tpu.dimension_semantics<parallel>], iteration_bounds = array<i64: 1>, scalar_prefetch = 0 : i64, scratch_operands = 0 : i64, tpu.core_type = #tpu.core_type<tc>, window_params = [{transform_indices = @transform_0, window_bounds = array<i64: 4>}, {transform_indices = @transform_1, window_bounds = array<i64: 8, 128>}, {transform_indices = @transform_2, window_bounds = array<i64: 8, 128>}]} {
    %c0 = arith.constant 0 : index
    %c0_0 = arith.constant 0 : index
    %0 = vector.load %arg2[%c0, %c0_0] : memref<8x128xf32, #tpu.memory_space<vmem>>, vector<8x128xf32>
    %cst = arith.constant dense<0.000000e+00> : vector<8xf32>
    %1 = vector.multi_reduction <add>, %0, %cst [1] : vector<8x128xf32> to vector<8xf32>
    %2 = vector.shape_cast %1 : vector<8xf32> to vector<8x1xf32>
    %3 = arith.mulf %0, %0 : vector<8x128xf32>
    %cst_1 = arith.constant dense<0.000000e+00> : vector<8xf32>
    %4 = vector.multi_reduction <add>, %3, %cst_1 [1] : vector<8x128xf32> to vector<8xf32>
    %5 = vector.shape_cast %4 : vector<8xf32> to vector<8x1xf32>
    %cst_2 = arith.constant dense<0xFF800000> : vector<8xf32>
    %6 = vector.multi_reduction <maximumf>, %0, %cst_2 [1] : vector<8x128xf32> to vector<8xf32>
    %7 = vector.shape_cast %6 : vector<8xf32> to vector<8x1xf32>
    %cst_3 = arith.constant 7.812500e-03 : f32
    %8 = vector.broadcast %cst_3 : f32 to vector<8x1xf32>
    %9 = arith.mulf %2, %8 : vector<8x1xf32>
    %10 = arith.mulf %2, %9 : vector<8x1xf32>
    %11 = arith.subf %5, %10 : vector<8x1xf32>
    %cst_4 = arith.constant 0.00787401571 : f32
    %12 = vector.broadcast %cst_4 : f32 to vector<8x1xf32>
    %13 = arith.mulf %11, %12 : vector<8x1xf32>
    %cst_5 = arith.constant 0.000000e+00 : f32
    %14 = vector.broadcast %cst_5 : f32 to vector<8x1xf32>
    %15 = arith.maximumf %13, %14 : vector<8x1xf32>
    %16 = math.sqrt %15 : vector<8x1xf32>
    %c0_6 = arith.constant 0 : index
    %17 = memref.load %arg1[%c0_6] : memref<4xf32, #tpu.memory_space<smem>>
    %18 = vector.broadcast %17 : f32 to vector<8x1xf32>
    %19 = arith.mulf %18, %9 : vector<8x1xf32>
    %c1 = arith.constant 1 : index
    %20 = memref.load %arg1[%c1] : memref<4xf32, #tpu.memory_space<smem>>
    %21 = vector.broadcast %20 : f32 to vector<8x1xf32>
    %22 = arith.mulf %21, %16 : vector<8x1xf32>
    %23 = arith.addf %19, %22 : vector<8x1xf32>
    %c2 = arith.constant 2 : index
    %24 = memref.load %arg1[%c2] : memref<4xf32, #tpu.memory_space<smem>>
    %25 = vector.broadcast %24 : f32 to vector<8x1xf32>
    %26 = arith.mulf %25, %7 : vector<8x1xf32>
    %27 = arith.addf %23, %26 : vector<8x1xf32>
    %c3 = arith.constant 3 : index
    %28 = memref.load %arg1[%c3] : memref<4xf32, #tpu.memory_space<smem>>
    %29 = vector.broadcast %28 : f32 to vector<8x1xf32>
    %30 = arith.addf %27, %29 : vector<8x1xf32>
    %31 = arith.negf %30 : vector<8x1xf32>
    %32 = math.exp %31 : vector<8x1xf32>
    %cst_7 = arith.constant 1.000000e+00 : f32
    %33 = vector.broadcast %cst_7 : f32 to vector<8x1xf32>
    %34 = arith.addf %33, %32 : vector<8x1xf32>
    %35 = arith.divf %33, %34 : vector<8x1xf32>
    %36 = vector.broadcast %35 : vector<8x1xf32> to vector<8x128xf32>
    %37 = arith.mulf %0, %36 : vector<8x128xf32>
    %c0_8 = arith.constant 0 : index
    %c0_9 = arith.constant 0 : index
    %38 = vector.load %arg3[%c0_8, %c0_9] : memref<8x128xf32, #tpu.memory_space<vmem>>, vector<8x128xf32>
    tpu.vector_store %arg3[%c0_8, %c0_9], %37 {strides = array<i32>} : memref<8x128xf32, #tpu.memory_space<vmem>>, vector<8x128xf32>,
    return
  }
  func.func @transform_0(%arg0: i32) -> i32 {
    %c0_i32 = arith.constant 0 : i32
    %c0_i32_0 = arith.constant 0 : i32
    return %c0_i32 : i32
  }
  func.func @transform_1(%arg0: i32) -> (i32, i32) {
    %c0_i32 = arith.constant 0 : i32
    %c0_i32_0 = arith.constant 0 : i32
    return %arg0, %c0_i32 : i32, i32
  }
  func.func @transform_2(%arg0: i32) -> (i32, i32) {
    %c0_i32 = arith.constant 0 : i32
    %c0_i32_0 = arith.constant 0 : i32
    return %arg0, %c0_i32 : i32, i32
  }
}

</mosaic_0001>

<llo_original>
// kernel: chat_model_forward.1
$region0: #{chat_model_forward.1}
  #allocation0 [shape = 'u32[]', space=smem, size = 0x4, offset = 0x4, fixed_abs, tag = 'smem constant byte address 0x4 - core index']
  #allocation1 [shape = 'u32[144,128]{1,0:T(1,128)}', space=vmem, size = 0x12000, scoped, tag = 'internal scratch']
  %s0 = inlined_call_operand.vmem [shape: f32[4], index: 0, kind: input, shape index: {}]
  %s1 = inlined_call_operand.vmem [shape: f32[8,128], index: 1, kind: input, shape index: {}]
  %s2 = inlined_call_operand.hbm [shape: f32[8,128], index: 2, kind: output, shape index: {}]
  %s3 = sld [smem:[#allocation0]]
  $region22: #{chat_model_forward.1} parent=0
    _
  %s5 = ssub.s32 1, %s3
  %s6 = scalar_select 0, %s5, %s3
  $region1: #{chat_model_forward.1} parent=0
    #allocation2 [shape = 'u8[512]{0}', space=smem, size = 0x200, scoped, tag = 'input window, operand 0, single buffered']
    #allocation3 [shape = 's32[1]{0}', space=sflag, size = 0x4, scoped, tag = 'scoped memory for chat_model_forward.1']
    #allocation4 [shape = 's32[1]{0}', space=sflag, size = 0x4, scoped, tag = 'scoped memory for chat_model_forward.1']
    #allocation5 [shape = 'u8[4096]{0}', space=vmem, size = 0x1000, scoped, tag = 'output window, operand 0, single buffered']
    %7 = vsyncpa [#allocation4], 0
    %8 = vsyncpa [#allocation3], 0
    // Predicated region
    $region2: #{chat_model_forward.1} parent=1 // pred_check
      _
    $region3: #{chat_model_forward.1} parent=1 // pred_check_branch
      %10 = sbr.rel (0) target = $region5
    $region4: #{chat_model_forward.1} parent=1 // pred_region
      %s12 = ssub.s32 16, 16
      %13 = vsyncadd [#allocation4], %s12
      %s15 = sshll.u32 %s0, 4
      %s16 = int_to_ptr.vmem [resolvable:$true] %s15
      %18 = dma.vmem_to_smem %s16, 16, [#allocation2], [#allocation4]
    $region5: #{chat_model_forward.1} parent=1 // pred_fallthru
      _
    // Predicated region
    $region6: #{chat_model_forward.1} parent=1 // pred_check
      _
    $region7: #{chat_model_forward.1} parent=1 // pred_check_branch
      %20 = sbr.rel (0) target = $region9
    $region8: #{chat_model_forward.1} parent=1 // pred_region
      _
    $region9: #{chat_model_forward.1} parent=1 // pred_fallthru
      _
    // Predicated region
    $region10: #{chat_model_forward.1} parent=1 // pred_check
      _
    $region11: #{chat_model_forward.1} parent=1 // pred_check_branch
      %22 = sbr.rel (0) target = $region13
    $region12: #{chat_model_forward.1} parent=1 // pred_region
      %23 = dma.done [#allocation4], 16
    $region13: #{chat_model_forward.1} parent=1 // pred_fallthru
      _
    %24 = sfence
    %v25 = vld [vmem:[%s1] sm:$0xff]
    %26 = vadd.xlane.f32.xlu0 %v25
    %v27 = vpop.xlane.xlu0 %26
    %v28 = vmul.f32 %v25, %v25
    %29 = vadd.xlane.f32.xlu0 %v28
    %v30 = vpop.xlane.xlu0 %29
    %31 = vmax.xlane.f32.xlu0 %v25
    %v32 = vpop.xlane.xlu0 %31
    %v33 = vmul.f32 %v27, 0.0078125
    %v34 = vmul.f32 %v27, %v33
    %v35 = vsub.f32 %v30, %v34
    %v36 = vmul.f32 %v35, 0.007874016
    %v37 = vmax.f32 %v36, 0.0
    %v38 = vrsqrt.pop %v37
    %v39 = vmul.f32 %v37, %v38
    %vm40 = vcmp.eq.f32.partialorder %v37, inf
    %v41 = vsel %vm40, %v37, %v39
    %vm42 = vcmp.eq.f32.partialorder %v37, 0.0
    %v43 = vand.u32 %v37, 2147483648
    %v44 = vsel %vm42, %v43, %v41
    %s45 = sld [smem:[#allocation2]]
    %v46 = vstv %s45
    %v47 = vmul.f32 %v46, %v33
    %s48 = sld [smem:[#allocation2 + $0x1]]
    %v49 = vstv %s48
    %v50 = vmul.f32 %v49, %v44
    %v51 = vadd.f32 %v47, %v50
    %s52 = sld [smem:[#allocation2 + $0x2]]
    %v53 = vstv %s52
    %v54 = vmul.f32 %v53, %v32
    %v55 = vadd.f32 %v51, %v54
    %s56 = sld [smem:[#allocation2 + $0x3]]
    %v57 = vstv %s56
    %v58 = vadd.f32 %v55, %v57
    %v59 = vxor.u32 %v58, 2147483648
    %v60 = vmul.f32 %v59, 1.442695
    %v61 = vpow.pop %v60
    %v62 = vadd.f32 %v61, 1.0
    %v63 = vrcp.pop %v62
    %v64 = vmul.f32 1.0, %v63
    %v65 = vmul.f32 %v25, %v64
    %66 = vst [vmem:[#allocation5] sm:$0xff] %v65
    // Predicated region
    $region14: #{chat_model_forward.1} parent=1 // pred_check
      _
    $region15: #{chat_model_forward.1} parent=1 // pred_check_branch
      %68 = sbr.rel (0) target = $region17
    $region16: #{chat_model_forward.1} parent=1 // pred_region
      %s70 = ssub.s32 128, 128
      %71 = vsyncadd [#allocation3], %s70
      %s73 = sshll.u32 [#allocation5], 4
      %s74 = int_to_ptr.vmem [resolvable:$true] %s73
      %76 = dma.vmem_to_hbm [thread:$0]  %s74, 128, %s2, [#allocation3]
    $region17: #{chat_model_forward.1} parent=1 // pred_fallthru
      _
    // Predicated region
    $region18: #{chat_model_forward.1} parent=1 // pred_check
      _
    $region19: #{chat_model_forward.1} parent=1 // pred_check_branch
      %78 = sbr.rel (0) target = $region21
    $region20: #{chat_model_forward.1} parent=1 // pred_region
      %79 = dma.done [#allocation3], 128
    $region21: #{chat_model_forward.1} parent=1 // pred_fallthru
      _
    %80 = vsyncpa [#allocation3], 1
    %81 = vsyncpa [#allocation4], 1

</llo_original>
